<compile_context>
chip_gen: v7x
topology: tpu7x:2x2x1
jax: 0.10.0
libtpu: 0.0.40
codegen_flags: <defaults>
</compile_context>

<pallas_src>
import functools

import jax
import jax.numpy as jnp
from jax.experimental import pallas as pl
from jax.experimental.pallas import tpu as pltpu


# ------------------------------- kernels -----------------------------------


def _mean_kernel(inv_sw_ref, mrow_ref, x_ref, out_ref, *, use_mxu):
    # inv_sw_ref: (B,) f32 in SMEM (scalar prefetch) — 1 / sum_w per batch
    # mrow_ref:   (1, S)  mask row (x.dtype)
    # x_ref:      (S, TD) input tile
    # out_ref:    (1, TD) mean output tile
    inv_sw = inv_sw_ref[pl.program_id(0)]                    # scalar f32
    m_row = mrow_ref[...]                                    # (1, S)
    x2d = x_ref[...]                                         # (S, TD)

    if use_mxu:
        # bf16 operands: masked sum over S on the MXU, f32 accumulation.
        num = jnp.dot(m_row, x2d, preferred_element_type=jnp.float32)   # (1, TD)
    else:
        # f32 operands: VPU sublane reduction (f32 MXU matvec is emulated).
        m_col = jnp.transpose(m_row).astype(jnp.float32)                # (S, 1)
        num = jnp.sum(x2d.astype(jnp.float32) * m_col, axis=0, keepdims=True)

    out_ref[...] = (num * inv_sw).astype(out_ref.dtype)


def _var_kernel(inv_sw_ref, mrow_ref, x_ref, out_ref, *, use_mxu):
    # inv_sw_ref: (B,) f32 in SMEM (scalar prefetch)
    # mrow_ref:   (1, S)  mask row
    # x_ref:      (S, TD) input tile
    # out_ref:    (1, TD) (variance - 1) output tile
    inv_sw = inv_sw_ref[pl.program_id(0)]                    # scalar f32
    m_row = mrow_ref[...]                                    # (1, S)
    x2d = x_ref[...]                                         # (S, TD)

    # Column form derived in-kernel (tiny transpose) — no extra narrow DMA.
    m_col = jnp.transpose(m_row).astype(jnp.float32)         # (S, 1)
    x_f32 = x2d.astype(jnp.float32)
    masked_x = x_f32 * m_col                                 # (S, TD) f32

    if use_mxu:
        mean = jnp.dot(m_row, x2d, preferred_element_type=jnp.float32) * inv_sw
    else:
        mean = jnp.sum(masked_x, axis=0, keepdims=True) * inv_sw        # (1, TD)

    # Preserve the reference's exact formula: ((x * m) - mean)^2 * m, summed
    # over S.  The numerator is f32, so always reduce on the VPU.
    sq = jnp.square(masked_x - mean)                         # (S, TD) f32
    var = jnp.sum(sq * m_col, axis=0, keepdims=True) * inv_sw

    out_ref[...] = (var - 1.0).astype(out_ref.dtype)


# ------------------------------- wrapper ------------------------------------


def _vmem_limit_bytes():
    """Generation-aware scoped-VMEM request (headroom for compiler scratch)."""
    try:
        cap = int(pltpu.get_tpu_info().vmem_capacity_bytes)
    except Exception:
        cap = 64 * 1024 * 1024
    # v5e/v6e (128 MiB physical) -> 64 MiB; v7x (64 MiB physical) -> 48 MiB.
    return max(32 * 1024 * 1024, min((cap * 3) // 4, 64 * 1024 * 1024))


def _choose_td(B, S, D_pad, itemsize, is_var, vmem_limit):
    """Pick a lane-dense D tile.

    Per-grid-step VMEM cost per output column:
      2 * S * itemsize   double-buffered x block (input dtype)
      + k * S * 4        in-kernel f32 temporaries
                         (var: f32 cast, masked_x, sq ~ 3; mean: ~1)
    Half of the scoped-VMEM limit is used as the tile budget.
    """
    per_col = 2 * S * itemsize + (3 if is_var else 1) * S * 4
    budget = max(vmem_limit // 2, 8 * 1024 * 1024)
    cap = budget // max(1, per_col)
    cap = max(128, (cap // 128) * 128)
    td = min(D_pad, cap)
    while D_pad % td != 0:          # D_pad and td are multiples of 128
        td -= 128
    td = max(td, 128)
    # Ensure >= 2 grid steps so both v7x TensorCores get work on tiny shapes.
    if B * (D_pad // td) < 2 and D_pad >= 256 and (D_pad // 2) % 128 == 0:
        td = D_pad // 2
        while D_pad % td != 0:
            td -= 128
        td = max(td, 128)
    return td


def squeeze_pallas(x, mask=None, mode="mean", td=None):
    """Pallas equivalent of Squeeze.forward.

    x:    (B, S, D) float array
    mask: optional (B, S) array (any dtype; cast to x.dtype)
    mode: 'mean' or 'var' (prefix match, like the PyTorch module)
    td:   optional override for the D tile size (testing / tuning)
    """
    B, S, D = x.shape
    if not (mode.startswith("mean") or mode.startswith("var")):
        raise NotImplementedError(
            "Incorrect Squeeze method, permitted values: mean, variance")
    is_var = mode.startswith("var")

    if mask is not None:
        m = mask.astype(x.dtype)
    else:
        m = jnp.ones((B, S), dtype=x.dtype)
    m_row = m.reshape(B, 1, S)

    # Hoisted per-batch normalizer (identical across all D tiles) -> SMEM.
    inv_sw = (1.0 / jnp.sum(m.astype(jnp.float32), axis=1)).astype(jnp.float32)

    # Pad D to a multiple of 128 so tiles stay lane-dense (output sliced back).
    D_pad = ((D + 127) // 128) * 128
    x_p = x if D_pad == D else jnp.pad(x, ((0, 0), (0, 0), (0, D_pad - D)))

    vmem_limit = _vmem_limit_bytes()
    itemsize = jnp.dtype(x.dtype).itemsize
    if td is None:
        td = _choose_td(B, S, D_pad, itemsize, is_var, vmem_limit)
    n_d_tiles = D_pad // td
    grid = (B, n_d_tiles)

    # bf16 -> MXU matvec; f32 -> VPU sublane reduction.
    use_mxu = x.dtype == jnp.bfloat16
    kernel = functools.partial(_var_kernel if is_var else _mean_kernel,
                               use_mxu=use_mxu)

    mrow_spec = pl.BlockSpec((None, 1, S), lambda b, d, inv: (b, 0, 0))
    x_spec = pl.BlockSpec((None, S, td), lambda b, d, inv: (b, 0, d))
    out_spec = pl.BlockSpec((None, 1, td), lambda b, d, inv: (b, 0, d))
    out_shape = jax.ShapeDtypeStruct((B, 1, D_pad), x.dtype)

    cparams = pltpu.CompilerParams(
        dimension_semantics=("parallel", "parallel"),
        vmem_limit_bytes=vmem_limit,
    )

    out = pl.pallas_call(
        kernel,
        out_shape=out_shape,
        grid_spec=pltpu.PrefetchScalarGridSpec(
            num_scalar_prefetch=1,
            grid=grid,
            in_specs=[mrow_spec, x_spec],
            out_specs=out_spec,
        ),
        compiler_params=cparams,
    )(inv_sw, m_row, x_p)

    if D_pad != D:
        out = out[:, :, :D]
    return out


# ------------------------------ reference -----------------------------------


def _reference(x, mask=None, mode="mean"):
    # pure-JAX reference mirroring the PyTorch code
    if mask is not None:
        w = mask.astype(x.dtype)[..., None] + jnp.zeros_like(x)
    else:
        w = jnp.ones_like(x)
    sw = jnp.sum(w, axis=-2, keepdims=True)
    mx = x * w
    mean = jnp.sum(mx, axis=-2, keepdims=True) / sw
    var = jnp.sum(jnp.square(mx - mean) * w, axis=-2, keepdims=True) / sw
    return mean if mode.startswith("mean") else var - 1.0


if __name__ == "__main__":
    key = jax.random.PRNGKey(0)

    # --- small shape matching the module's forward: (B, S, D) = (2, 8, 32) ---
    B, S, D = 2, 8, 32
    kx, km, k2 = jax.random.split(key, 3)
    x = jax.random.normal(kx, (B, S, D), dtype=jnp.float32)
    # deterministic mask with at least one valid position per row
    mask = (jax.random.uniform(km, (B, S)) > 0.3).astype(jnp.float32)
    mask = mask.at[:, 0].set(1.0)

    out_mean = squeeze_pallas(x, mask, mode="mean")
    out_var = squeeze_pallas(x, mask, mode="var")
    out_nomask = squeeze_pallas(x, None, mode="mean")
    jax.block_until_ready((out_mean, out_var, out_nomask))

    assert out_mean.shape == (B, 1, D)
    assert jnp.allclose(out_mean, _reference(x, mask, "mean"), atol=1e-5)
    assert jnp.allclose(out_var, _reference(x, mask, "var"), atol=1e-5)
    assert jnp.allclose(out_nomask, _reference(x, None, "mean"), atol=1e-5)

    # --- second shape exercising the lane-dense D tiling path (TD=128) ---
    B2, S2, D2 = 2, 16, 256
    x2 = jax.random.normal(k2, (B2, S2, D2), dtype=jnp.float32)
    mask2 = (jax.random.uniform(km, (B2, S2)) > 0.5).astype(jnp.float32)
    mask2 = mask2.at[:, 0].set(1.0)

    out_mean2 = squeeze_pallas(x2, mask2, mode="mean", td=128)
    out_var2 = squeeze_pallas(x2, mask2, mode="var", td=128)
    jax.block_until_ready((out_mean2, out_var2))

    assert jnp.allclose(out_mean2, _reference(x2, mask2, "mean"), atol=1e-5)
    assert jnp.allclose(out_var2, _reference(x2, mask2, "var"), atol=1e-5)

    # --- bf16 input exercising the MXU matvec path ---
    x3 = x2.astype(jnp.bfloat16)
    out_mean3 = squeeze_pallas(x3, mask2, mode="mean")
    jax.block_until_ready(out_mean3)
    assert jnp.allclose(out_mean3.astype(jnp.float32),
                        _reference(x3, mask2, "mean").astype(jnp.float32),
                        atol=1e-1, rtol=1e-1)

    print("KERNEL_OK")
</pallas_src>

<mosaic_0001>
module attributes {stable_mosaic.version = 11 : i64} {
  func.func @_mean_kernel(%arg0: i32, %arg1: i32, %arg2: memref<2xf32, #tpu.memory_space<smem>>, %arg3: memref<1x1x8xf32, #tpu.memory_space<vmem>>, %arg4: memref<1x8x128xf32, #tpu.memory_space<vmem>>, %arg5: memref<1x1x128xf32, #tpu.memory_space<vmem>>) attributes {dimension_semantics = [#tpu.dimension_semantics<parallel>, #tpu.dimension_semantics<parallel>], iteration_bounds = array<i64: 2, 1>, scalar_prefetch = 1 : i64, scratch_operands = 0 : i64, tpu.core_type = #tpu.core_type<tc>, window_params = [{transform_indices = @transform_0, window_bounds = array<i64: 1, 1, 8>}, {transform_indices = @transform_1, window_bounds = array<i64: 1, 8, 128>}, {transform_indices = @transform_2, window_bounds = array<i64: 1, 1, 128>}]} {
    %0 = arith.index_cast %arg0 : i32 to index
    %1 = memref.load %arg2[%0] : memref<2xf32, #tpu.memory_space<smem>>
    %c0 = arith.constant 0 : index
    %c0_0 = arith.constant 0 : index
    %c0_1 = arith.constant 0 : index
    %2 = vector.load %arg3[%c0, %c0_0, %c0_1] : memref<1x1x8xf32, #tpu.memory_space<vmem>>, vector<1x1x8xf32>
    %3 = vector.shape_cast %2 : vector<1x1x8xf32> to vector<1x8xf32>
    %c0_2 = arith.constant 0 : index
    %c0_3 = arith.constant 0 : index
    %c0_4 = arith.constant 0 : index
    %4 = vector.load %arg4[%c0_2, %c0_3, %c0_4] : memref<1x8x128xf32, #tpu.memory_space<vmem>>, vector<1x8x128xf32>
    %5 = vector.shape_cast %4 : vector<1x8x128xf32> to vector<8x128xf32>
    %6 = tpu.transpose %3, [1, 0] : vector<1x8xf32> -> vector<8x1xf32>
    %7 = vector.broadcast %6 : vector<8x1xf32> to vector<8x128xf32>
    %8 = arith.mulf %5, %7 : vector<8x128xf32>
    %cst = arith.constant dense<0.000000e+00> : vector<128xf32>
    %9 = vector.multi_reduction <add>, %8, %cst [0] : vector<8x128xf32> to vector<128xf32>
    %10 = vector.shape_cast %9 : vector<128xf32> to vector<1x128xf32>
    %11 = vector.broadcast %1 : f32 to vector<1x128xf32>
    %12 = arith.mulf %10, %11 : vector<1x128xf32>
    %c0_5 = arith.constant 0 : index
    %c0_6 = arith.constant 0 : index
    %c0_7 = arith.constant 0 : index
    %13 = vector.load %arg5[%c0_5, %c0_6, %c0_7] : memref<1x1x128xf32, #tpu.memory_space<vmem>>, vector<1x1x128xf32>
    %14 = vector.shape_cast %13 : vector<1x1x128xf32> to vector<1x128xf32>
    %15 = vector.shape_cast %12 : vector<1x128xf32> to vector<1x1x128xf32>
    tpu.vector_store %arg5[%c0_5, %c0_6, %c0_7], %15 {strides = array<i32>} : memref<1x1x128xf32, #tpu.memory_space<vmem>>, vector<1x1x128xf32>,
    return
  }
  func.func @transform_0(%arg0: i32, %arg1: i32, %arg2: memref<2xf32, #tpu.memory_space<smem>>) -> (i32, i32, i32) {
    %c0_i32 = arith.constant 0 : i32
    %c0_i32_0 = arith.constant 0 : i32
    %c0_i32_1 = arith.constant 0 : i32
    return %arg0, %c0_i32, %c0_i32_0 : i32, i32, i32
  }
  func.func @transform_1(%arg0: i32, %arg1: i32, %arg2: memref<2xf32, #tpu.memory_space<smem>>) -> (i32, i32, i32) {
    %c0_i32 = arith.constant 0 : i32
    %c0_i32_0 = arith.constant 0 : i32
    return %arg0, %c0_i32, %arg1 : i32, i32, i32
  }
  func.func @transform_2(%arg0: i32, %arg1: i32, %arg2: memref<2xf32, #tpu.memory_space<smem>>) -> (i32, i32, i32) {
    %c0_i32 = arith.constant 0 : i32
    %c0_i32_0 = arith.constant 0 : i32
    return %arg0, %c0_i32, %arg1 : i32, i32, i32
  }
}

</mosaic_0001>

<llo_original>
// kernel: tpu_custom_call.1
$region0: #{tpu_custom_call.1}
  #allocation0 [shape = 'u32[]', space=smem, size = 0x4, offset = 0x4, fixed_abs, tag = 'smem constant byte address 0x4 - core index']
  #allocation1 [shape = 'u32[144,128]{1,0:T(1,128)}', space=vmem, size = 0x12000, scoped, tag = 'internal scratch']
  #allocation2 [shape = 's32[1]{0}', space=sflag, size = 0x4, scoped, tag = 'scoped memory for tpu_custom_call.1']
  #allocation3 [shape = 'u8[512]{0}', space=smem, size = 0x200, scoped, tag = 'prefetched SMEM operand 0']
  %s0 = inlined_call_operand.hbm [shape: f32[2], index: 0, kind: input, shape index: {}]
  %s1 = inlined_call_operand.vmem [shape: f32[2,1,8], index: 1, kind: input, shape index: {}]
  %s2 = inlined_call_operand.hbm [shape: f32[2,8,128], index: 2, kind: input, shape index: {}]
  %s3 = inlined_call_operand.hbm [shape: f32[2,1,128], index: 3, kind: output, shape index: {}]
  %s4 = sld [smem:[#allocation0]]
  $region45: #{tpu_custom_call.1} parent=0
    _
  %s6 = ssub.s32 1, %s4
  %s7 = scalar_select 0, %s6, %s4
  %9 = dma.hbm_to_smem %s0, 16, [#allocation3], [#allocation2]
  %10 = dma.done [#allocation2], 16
  %11 = sfence
  $region1: #{tpu_custom_call.1} parent=0
    #allocation4 [shape = 'u8[8192]{0}', space=vmem, size = 0x2000, scoped, tag = 'input window, operand 2']
    #allocation5 [shape = 's32[2]{0}', space=sflag, size = 0x8, scoped, tag = 'scoped memory for tpu_custom_call.1']
    #allocation6 [shape = 's32[2]{0}', space=sflag, size = 0x8, scoped, tag = 'scoped memory for tpu_custom_call.1']
    #allocation7 [shape = 'u8[1024]{0}', space=vmem, size = 0x400, scoped, tag = 'output window, operand 0']
    %12 = vsyncpa [#allocation5], 0
    %s13 = scalar_lea.sflag [#allocation5], 1
    %14 = vsyncpa %s13, 0
    %15 = vsyncpa [#allocation6], 0
    %s16 = scalar_lea.sflag [#allocation6], 1
    %17 = vsyncpa %s16, 0
    loop: start=0, step=1, limit=4
    $region2: #{tpu_custom_call.1} parent=1 // loop_pre_header
      _
    $region3: #{tpu_custom_call.1} parent=1 // loop_header
      %s19 = sphi 0, %s23
      %p20 = scmp.ge.s32.totalorder %s19, 4
      %s26 = sphi 0, %s38
      %s27 = sphi 0, %s34
      %s28 = sphi 0, %s26
      %s29 = sphi 0, %s27
      %s30 = sphi 0, %s28
      %s31 = sphi 0, %s29
      %s41 = sphi 0, %s43
      %s44 = sphi 0, %s41
      %s45 = sphi 0, %s44
      %s61 = sphi 0, %s45
      %s69 = sphi 0, %s71
      %s72 = sphi 0, %s69
      %s73 = sphi 0, %s72
      %s89 = sphi 0, %s73
      %s97 = sphi 0, %s99
      %s100 = sphi 0, %s97
      %s101 = sphi 0, %s100
      %s117 = sphi 0, %s101
    $region4: #{tpu_custom_call.1} parent=1 // loop_header_branch
      %22 = sbr.rel (%p20) target = $region8
    $region5: #{tpu_custom_call.1} parent=1 // loop_body
      %s24 = ssub.s32 %s19, 1
      %s25 = ssub.s32 %s19, 2
      %s32 = sadd.s32 1, %s27
      %p33 = scmp.ge.s32.totalorder %s32, 1
      %s34 = scalar_select %p33, 0, %s32
      %s35 = sadd.s32 1, %s26
      %s36 = scalar_select %p33, %s35, %s26
      %p37 = scmp.ge.s32.totalorder %s36, 2
      %s38 = scalar_select %p37, 0, %s36
      %s39 = ssub.s32 %s26, %s38
      %p40 = scmp.eq.s32.totalorder %s39, 0
      %s42 = sadd.s32 %s41, 1
      %s43 = scalar_select %p40, %s41, %s42
      %p46 = pneg %p40
      %p47 = scmp.eq.s32.totalorder %s19, 1
      %p48 = por %p46, %p47
      %p49 = scmp.ne.s32.totalorder %s41, %s44
      %p50 = scmp.eq.s32.totalorder %s19, 0
      %p51 = por %p49, %p50
      %p52 = scmp.ne.s32.totalorder %s41, %s44
      %p53 = scmp.eq.s32.totalorder %s24, 1
      %p54 = por %p52, %p53
      %p55 = scmp.ne.s32.totalorder %s44, %s45
      %p56 = scmp.eq.s32.totalorder %s24, 0
      %p57 = por %p55, %p56
      %p58 = scmp.ne.s32.totalorder %s44, %s45
      %p59 = scmp.eq.s32.totalorder %s25, 1
      %p60 = por %p58, %p59
      %p62 = scmp.ne.s32.totalorder %s45, %s61
      %p63 = scmp.eq.s32.totalorder %s25, 0
      %p64 = por %p62, %p63
      %s65 = ssub.s32 %s26, %s38
      %s66 = ssub.s32 %s27, %s34
      %s67 = sor.u32 %s65, %s66
      %p68 = scmp.eq.s32.totalorder %s67, 0
      %s70 = sadd.s32 %s69, 1
      %s71 = scalar_select %p68, %s69, %s70
      %p74 = pneg %p68
      %p75 = scmp.eq.s32.totalorder %s19, 1
      %p76 = por %p74, %p75
      %p77 = scmp.ne.s32.totalorder %s69, %s72
      %p78 = scmp.eq.s32.totalorder %s19, 0
      %p79 = por %p77, %p78
      %p80 = scmp.ne.s32.totalorder %s69, %s72
      %p81 = scmp.eq.s32.totalorder %s24, 1
      %p82 = por %p80, %p81
      %p83 = scmp.ne.s32.totalorder %s72, %s73
      %p84 = scmp.eq.s32.totalorder %s24, 0
      %p85 = por %p83, %p84
      %p86 = scmp.ne.s32.totalorder %s72, %s73
      %p87 = scmp.eq.s32.totalorder %s25, 1
      %p88 = por %p86, %p87
      %p90 = scmp.ne.s32.totalorder %s73, %s89
      %p91 = scmp.eq.s32.totalorder %s25, 0
      %p92 = por %p90, %p91
      %s93 = ssub.s32 %s26, %s38
      %s94 = ssub.s32 %s27, %s34
      %s95 = sor.u32 %s93, %s94
      %p96 = scmp.eq.s32.totalorder %s95, 0
      %s98 = sadd.s32 %s97, 1
      %s99 = scalar_select %p96, %s97, %s98
      %p102 = pneg %p96
      %p103 = scmp.eq.s32.totalorder %s19, 1
      %p104 = por %p102, %p103
      %p105 = scmp.ne.s32.totalorder %s97, %s100
      %p106 = scmp.eq.s32.totalorder %s19, 0
      %p107 = por %p105, %p106
      %p108 = scmp.ne.s32.totalorder %s97, %s100
      %p109 = scmp.eq.s32.totalorder %s24, 1
      %p110 = por %p108, %p109
      %p111 = scmp.ne.s32.totalorder %s100, %s101
      %p112 = scmp.eq.s32.totalorder %s24, 0
      %p113 = por %p111, %p112
      %p114 = scmp.ne.s32.totalorder %s100, %s101
      %p115 = scmp.eq.s32.totalorder %s25, 1
      %p116 = por %p114, %p115
      %p118 = scmp.ne.s32.totalorder %s101, %s117
      %p119 = scmp.eq.s32.totalorder %s25, 0
      %p120 = por %p118, %p119
      %p121 = scmp.le.s32.totalorder 1, %s19
      %p122 = scmp.lt.s32.totalorder %s19, 3
      %p123 = pnand %p121, %p122
      %p124 = pneg %p123
      // Predicated region
      $region9: #{tpu_custom_call.1} parent=5 // pred_check
        _
      $region10: #{tpu_custom_call.1} parent=5 // pred_check_branch
        %126 = sbr.rel (%p123) target = $region12
      $region11: #{tpu_custom_call.1} parent=5 // pred_region
        %s127 = ssub.s32 %s19, 1
      $region12: #{tpu_custom_call.1} parent=5 // pred_fallthru
        _
      %p128 = scmp.lt.s32.totalorder %s19, 2
      // Predicated region
      $region13: #{tpu_custom_call.1} parent=5 // pred_check
        %p129 = pneg %p128
      $region14: #{tpu_custom_call.1} parent=5 // pred_check_branch
        %131 = sbr.rel (%p129) target = $region16
      $region15: #{tpu_custom_call.1} parent=5 // pred_region
        // Predicated region
        $region17: #{tpu_custom_call.1} parent=15 // pred_check
          %p132 = pneg %p51
        $region18: #{tpu_custom_call.1} parent=15 // pred_check_branch
          %134 = sbr.rel (%p132) target = $region20
        $region19: #{tpu_custom_call.1} parent=15 // pred_region
          %p135 = scmp.lt.s32.totalorder %s26, 1
          %s136 = scalar_select %p135, %s26, 1
          %s137 = scalar_lea.vmem %s1, %s136
        $region20: #{tpu_custom_call.1} parent=15 // pred_fallthru
          _
        // Predicated region
        $region21: #{tpu_custom_call.1} parent=15 // pred_check
          %p138 = pneg %p79
        $region22: #{tpu_custom_call.1} parent=15 // pred_check_branch
          %140 = sbr.rel (%p138) target = $region24
        $region23: #{tpu_custom_call.1} parent=15 // pred_region
          %s141 = sand.u32 %s69, 1
          %s142 = scalar_lea.sflag [#allocation5], %s141
          %s143 = sand.u32 %s69, 1
          %s144 = smul.addr %s143, 8
          %s145 = scalar_lea.vmem [#allocation4], %s144
          %s147 = ssub.s32 128, 128
          %148 = vsyncadd %s142, %s147
          %s149 = sadd.s32 %s27, %s26
          %s150 = smul.addr %s149, 128
          %s151 = scalar_lea.hbm %s2, %s150
          %s153 = sshll.u32 %s145, 4
          %s154 = int_to_ptr.vmem [resolvable:$true] %s153
          %156 = dma.hbm_to_vmem [thread:$0]  %s151, 128, %s154, %s142
        $region24: #{tpu_custom_call.1} parent=15 // pred_fallthru
          _
      $region16: #{tpu_custom_call.1} parent=5 // pred_fallthru
        _
      %p157 = scmp.le.s32.totalorder 1, %s19
      %p158 = scmp.lt.s32.totalorder %s19, 3
      %p159 = pnand %p157, %p158
      %p160 = pneg %p159
      // Predicated region
      $region25: #{tpu_custom_call.1} parent=5 // pred_check
        _
      $region26: #{tpu_custom_call.1} parent=5 // pred_check_branch
        %162 = sbr.rel (%p159) target = $region28
      $region27: #{tpu_custom_call.1} parent=5 // pred_region
        %s163 = ssub.s32 %s19, 1
        %s164 = sand.u32 %s72, 1
        %s165 = scalar_lea.sflag [#allocation5], %s164
        %s166 = sand.u32 %s72, 1
        %s167 = smul.addr %s166, 8
        %s168 = scalar_lea.vmem [#allocation4], %s167
        // Predicated region
        $region29: #{tpu_custom_call.1} parent=27 // pred_check
          %p169 = pneg %p85
        $region30: #{tpu_custom_call.1} parent=27 // pred_check_branch
          %171 = sbr.rel (%p169) target = $region32
        $region31: #{tpu_custom_call.1} parent=27 // pred_region
          %172 = dma.done %s165, 128
        $region32: #{tpu_custom_call.1} parent=27 // pred_fallthru
          _
        %p173 = scmp.lt.s32.totalorder %s28, 1
        %s174 = scalar_select %p173, %s28, 1
        %s175 = scalar_lea.vmem %s1, %s174
        %p176 = pneg %p57
        %p177 = pneg %p54
        %s178 = sand.u32 %s72, 1
        %s179 = scalar_lea.sflag [#allocation5], %s178
        %s180 = sand.u32 %s72, 1
        %s181 = smul.addr %s180, 8
        %s182 = scalar_lea.vmem [#allocation4], %s181
        %p183 = pneg %p85
        %p184 = pneg %p82
        %p185 = pneg %p113
        %p186 = pneg %p110
        %s187 = sand.u32 %s100, 1
        %s188 = scalar_lea.sflag [#allocation6], %s187
        %s189 = sand.u32 %s100, 1
        %s190 = scalar_lea.vmem [#allocation7], %s189
        %p191 = scmp.lt.s32.totalorder %s28, 1
        %s192 = scalar_select %p191, %s28, 1
        %s193 = scalar_lea.vmem %s1, %s192
        %s194 = sld [smem:[#allocation3 + %s28]]
        %v195 = vld [vmem:[%s193] sm:$0x1]
        %v196 = vld [vmem:[%s168] sm:$0xff]
        %197 = vxpose.xlu0.b32.start [1/16] %v195, 128
        %198 = vxpose.xlu0.b32.cont [2/16] 0.0, 128
        %199 = vxpose.xlu0.b32.cont [3/16] 0.0, 128
        %200 = vxpose.xlu0.b32.cont [4/16] 0.0, 128
        %201 = vxpose.xlu0.b32.cont [5/16] 0.0, 128
        %202 = vxpose.xlu0.b32.cont [6/16] 0.0, 128
        %203 = vxpose.xlu0.b32.cont [7/16] 0.0, 128
        %204 = vxpose.xlu0.b32.cont [8/16] 0.0, 128
        %205 = vxpose.xlu0.b32.cont [9/16] 0.0, 128
        %206 = vxpose.xlu0.b32.cont [10/16] 0.0, 128
        %207 = vxpose.xlu0.b32.cont [11/16] 0.0, 128
        %208 = vxpose.xlu0.b32.cont [12/16] 0.0, 128
        %209 = vxpose.xlu0.b32.cont [13/16] 0.0, 128
        %210 = vxpose.xlu0.b32.cont [14/16] 0.0, 128
        %211 = vxpose.xlu0.b32.cont [15/16] 0.0, 128
        %212 = vxpose.xlu0.b32.end [16/16] 0.0, 128
        %v213 = vpop.trf.xlu0
        %v214 = vpop.trf.xlu0
        %v215 = vpop.trf.xlu0
        %v216 = vpop.trf.xlu0
        %v217 = vpop.trf.xlu0
        %v218 = vpop.trf.xlu0
        %v219 = vpop.trf.xlu0
        %v220 = vpop.trf.xlu0
        %v221 = vpop.trf.xlu0
        %v222 = vpop.trf.xlu0
        %v223 = vpop.trf.xlu0
        %v224 = vpop.trf.xlu0
        %v225 = vpop.trf.xlu0
        %v226 = vpop.trf.xlu0
        %v227 = vpop.trf.xlu0
        %v228 = vpop.trf.xlu0
        %230 = vset.pattern.permute.xlu0 0
        %231 = vperm.xlu0 %230, %v213
        %v232 = vpop.permute.xlu0 %231
        %v234 = vmul.f32 %v196, %v232
        %v235 = vrot.slane %v234, 4
        %v236 = vadd.f32 %v234, %v235
        %v237 = vrot.slane %v236, 2
        %v238 = vadd.f32 %v236, %v237
        %v239 = vrot.slane %v238, 1
        %v240 = vadd.f32 %v238, %v239
        %v241 = vstv %s194
        %v242 = vmul.f32 %v240, %v241
        %243 = vst [vmem:[%s190] sm:$0x1] %v242
        %s244 = sand.u32 %s100, 1
        %s245 = scalar_lea.sflag [#allocation6], %s244
        %s246 = sand.u32 %s100, 1
        %s247 = scalar_lea.vmem [#allocation7], %s246
        // Predicated region
        $region33: #{tpu_custom_call.1} parent=27 // pred_check
          %p248 = pneg %p110
        $region34: #{tpu_custom_call.1} parent=27 // pred_check_branch
          %250 = sbr.rel (%p248) target = $region36
        $region35: #{tpu_custom_call.1} parent=27 // pred_region
          %s252 = ssub.s32 16, 16
          %253 = vsyncadd %s245, %s252
          %s254 = sadd.s32 %s29, %s28
          %s255 = smul.addr %s254, 16
          %s256 = scalar_lea.hbm %s3, %s255
          %s258 = sshll.u32 %s247, 4
          %s259 = int_to_ptr.vmem [resolvable:$true] %s258
          %261 = dma.vmem_to_hbm [thread:$0]  %s259, 16, %s256, %s245
        $region36: #{tpu_custom_call.1} parent=27 // pred_fallthru
          _
      $region28: #{tpu_custom_call.1} parent=5 // pred_fallthru
        _
      %p262 = scmp.le.s32.totalorder 2, %s19
      // Predicated region
      $region37: #{tpu_custom_call.1} parent=5 // pred_check
        %p263 = pneg %p262
      $region38: #{tpu_custom_call.1} parent=5 // pred_check_branch
        %265 = sbr.rel (%p263) target = $region40
      $region39: #{tpu_custom_call.1} parent=5 // pred_region
        %s266 = ssub.s32 %s19, 2
        // Predicated region
        $region41: #{tpu_custom_call.1} parent=39 // pred_check
          %p267 = pneg %p116
        $region42: #{tpu_custom_call.1} parent=39 // pred_check_branch
          %269 = sbr.rel (%p267) target = $region44
        $region43: #{tpu_custom_call.1} parent=39 // pred_region
          %s270 = sand.u32 %s101, 1
          %s271 = scalar_lea.sflag [#allocation6], %s270
          %s272 = sand.u32 %s101, 1
          %s273 = scalar_lea.vmem [#allocation7], %s272
          %274 = dma.done %s271, 16
        $region44: #{tpu_custom_call.1} parent=39 // pred_fallthru
          _
      $region40: #{tpu_custom_call.1} parent=5 // pred_fallthru
        _
    $region6: #{tpu_custom_call.1} parent=1 // loop_footer
      %s23 = sadd.s32 1, %s19
    $region7: #{tpu_custom_call.1} parent=1 // loop_footer_branch
      %18 = sbr.rel target = $region3
    $region8: #{tpu_custom_call.1} parent=1 // loop_exit
      _
    %275 = vsyncpa [#allocation5], 1
    %s276 = scalar_lea.sflag [#allocation5], 1
    %277 = vsyncpa %s276, 1
    %278 = vsyncpa [#allocation6], 1
    %s279 = scalar_lea.sflag [#allocation6], 1
    %280 = vsyncpa %s279, 1

</llo_original>
